<compile_context>
chip_gen: v7x
topology: tpu7x:2x2x1
jax: 0.10.0
libtpu: 0.0.40
codegen_flags: <defaults>
</compile_context>

<pallas_src>
import jax
import jax.numpy as jnp
from jax import lax
from jax.experimental import pallas as pl
from jax.experimental.pallas import tpu as pltpu

# ----------------------------- model sizes ---------------------------------
B = 4              # batch (number of observations)
T = 8              # tokens per observation
V = 100            # token vocabulary
E = 64             # embedding dim
H = 128            # state / hidden dim
N_TMPL = 16        # act_generator.template_collection.template_num
N_OBJ = 32         # object vocabulary per slot
SLOTS = 4          # ['v', 'o1', 'p', 'o2']
SLOT_NAMES = ("v", "o1", "p", "o2")

# ----------------------------- padded / fused layout ------------------------
BLK_B = 8                     # sublane-aligned batch block per grid step
V_PAD = 128                   # lane-aligned vocab for one-hot matmul
TMPL_BLK = 128                # tmpl logits live in lanes [0:N_TMPL) of this block
SLOT_BLK = SLOTS * N_OBJ      # 128 (exactly one lane block)
N_OUT = TMPL_BLK + SLOT_BLK   # 256 fused, lane-dense head width


# ----------------------------- in-kernel helpers ----------------------------
def _argmax_lanes(x):
    """First-index argmax over the lane (last) axis; returns (rows, 1) int32."""
    n = x.shape[-1]
    m = jnp.max(x, axis=-1, keepdims=True)
    idx = lax.broadcasted_iota(jnp.int32, x.shape, 1)
    cand = jnp.where(x == m, idx, jnp.full(x.shape, n, jnp.int32))
    return jnp.min(cand, axis=-1, keepdims=True)


# ----------------------------- fused Pallas kernel --------------------------
def agent_fused_kernel(ids_ref, w_fused_ref, b_enc_ref, w_heads_ref,
                       b_heads_ref, mask_ref,
                       state_ref, logits_ref, slot_mask_ref, act_ref):
    # 1) token-count "one-hot" matrix.  The 1/T mean-pool scale AND the
    #    embedding matmul are folded into w_fused = (emb @ w_enc)/T at init,
    #    so one MXU pass maps raw counts -> encoder pre-activation.
    ids = ids_ref[...]                                          # (BLK_B, T) int32
    iota_v = lax.broadcasted_iota(jnp.int32, (BLK_B, V_PAD), 1)
    cnt = jnp.zeros((BLK_B, V_PAD), jnp.float32)                # f32 VPU accum (v5e-safe)
    for t in range(T):                                          # static unroll, T=8 compares
        cnt = cnt + (iota_v == ids[:, t:t + 1]).astype(jnp.float32)

    # 2) fused embedding+encoder dense + ReLU -> state  (MXU pass #1)
    h = jnp.dot(cnt.astype(jnp.bfloat16), w_fused_ref[...],
                preferred_element_type=jnp.float32) + b_enc_ref[...]
    state = jnp.maximum(h, 0.0)                                 # (BLK_B, H) f32
    state_ref[...] = state

    # 3) fused act_generator heads: one lane-dense [H, 256] MXU pass (#2)
    #    lanes [0:16]    -> template logits (lanes [16:128] padding, masked below)
    #    lanes [128:256] -> slot logits (v, o1, p, o2 each 32 wide)
    raw = jnp.dot(state.astype(jnp.bfloat16), w_heads_ref[...],
                  preferred_element_type=jnp.float32) + b_heads_ref[...]
    # Template-mask bias built in-kernel: 0 where allowed, -1e9 where masked /
    # padded lane / padded row (mask slab carries zeros there).
    tmpl_blk = raw[:, :TMPL_BLK] + (mask_ref[...] - 1.0) * 1e9
    slot_blk = raw[:, TMPL_BLK:]

    # single lane-dense stores (both halves 128-lane aligned -> layout-free concat)
    logits_ref[...] = jnp.concatenate([tmpl_blk, slot_blk], axis=-1)
    slot_mask_ref[...] = (slot_blk > 0.0).astype(jnp.float32)

    # 4) greedy action selection; act columns: [tmpl, v, o1, p, o2, 0, 0, 0]
    #    tmpl argmax over the full 128-lane block (padding lanes are -1e9).
    vals = [_argmax_lanes(tmpl_blk)]
    for s in range(SLOTS):
        vals.append(_argmax_lanes(slot_blk[:, s * N_OBJ:(s + 1) * N_OBJ]))
    col = lax.broadcasted_iota(jnp.int32, (BLK_B, 8), 1)
    acts = jnp.zeros((BLK_B, 8), jnp.int32)
    for j, v in enumerate(vals):                                # build tile in registers
        acts = jnp.where(col == j, v, acts)
    act_ref[...] = acts                                         # ONE store, no masked RMW


def _agent_pallas(ids_pad, mask_pad, w_fused, b_enc, w_heads, b_heads):
    b_pad = ids_pad.shape[0]
    nblk = b_pad // BLK_B
    flops = nblk * (2 * BLK_B * V_PAD * H + 2 * BLK_B * H * N_OUT)
    bytes_accessed = (ids_pad.size * 4 + mask_pad.size * 4
                      + w_fused.size * 2 + b_enc.size * 4
                      + w_heads.size * 2 + b_heads.size * 4
                      + b_pad * (H + N_OUT + SLOT_BLK + 8) * 4)
    return pl.pallas_call(
        agent_fused_kernel,
        out_shape=(
            jax.ShapeDtypeStruct((b_pad, H), jnp.float32),        # state
            jax.ShapeDtypeStruct((b_pad, N_OUT), jnp.float32),    # fused logits slab
            jax.ShapeDtypeStruct((b_pad, SLOT_BLK), jnp.float32), # slot mask (>0)
            jax.ShapeDtypeStruct((b_pad, 8), jnp.int32),          # greedy actions
        ),
        grid=(nblk,),
        in_specs=[
            pl.BlockSpec((BLK_B, T), lambda i: (i, 0)),           # token ids
            pl.BlockSpec((V_PAD, H), lambda i: (0, 0)),           # w_fused (resident)
            pl.BlockSpec((1, H), lambda i: (0, 0)),               # b_enc
            pl.BlockSpec((H, N_OUT), lambda i: (0, 0)),           # w_heads (resident)
            pl.BlockSpec((1, N_OUT), lambda i: (0, 0)),           # b_heads
            pl.BlockSpec((BLK_B, TMPL_BLK), lambda i: (i, 0)),    # tmpl mask (padded)
        ],
        out_specs=(
            pl.BlockSpec((BLK_B, H), lambda i: (i, 0)),
            pl.BlockSpec((BLK_B, N_OUT), lambda i: (i, 0)),
            pl.BlockSpec((BLK_B, SLOT_BLK), lambda i: (i, 0)),
            pl.BlockSpec((BLK_B, 8), lambda i: (i, 0)),
        ),
        compiler_params=pltpu.CompilerParams(
            dimension_semantics=("parallel",)),                   # shard batch on v7x TCs
        cost_estimate=pl.CostEstimate(flops=flops, transcendentals=0,
                                      bytes_accessed=bytes_accessed),
    )(ids_pad, w_fused, b_enc, w_heads, b_heads, mask_pad)


# ----------------------------- wrapper --------------------------------------
def agent_forward(obs_tokens, params, tmpl_mask=None):
    """Mirrors Agent.forward(obs): returns (outputs_dict, state)."""
    bn = obs_tokens.shape[0]
    if tmpl_mask is None:
        # Agent.get_template_mask default cache entry: ones(template_num) per obs.
        tmpl_mask = jnp.ones((bn, N_TMPL), jnp.float32)

    nblk = -(-bn // BLK_B)
    b_pad = nblk * BLK_B

    # pad batch to sublane-aligned multiple of BLK_B; pad mask lanes to 128
    # (padded lanes / rows are 0 -> -1e9 bias in-kernel, never win argmax).
    ids_pad = jnp.zeros((b_pad, T), jnp.int32).at[:bn].set(obs_tokens)
    mask_pad = jnp.zeros((b_pad, TMPL_BLK), jnp.float32).at[:bn, :N_TMPL].set(tmpl_mask)

    state_p, logits_p, slot_mask_p, acts_p = _agent_pallas(
        ids_pad, mask_pad, params["w_fused"], params["b_enc"],
        params["w_heads"], params["b_heads"])

    state = state_p[:bn]
    # TODO(synk): returned tmpl logits include the additive -1e9 mask bias (the
    # same logits used for action selection); an unmasked-logits variant would
    # need a second output or a wrapper-side un-bias.
    tmpl_logits = logits_p[:bn, :N_TMPL]
    slot_logits = logits_p[:bn, TMPL_BLK:].reshape(bn, SLOTS, N_OBJ)
    slot_mask = slot_mask_p[:bn].reshape(bn, SLOTS, N_OBJ)
    acts = acts_p[:bn]

    # TODO(synk): stochastic explorer (epsilon-greedy) not modeled; greedy argmax
    # (computed in-kernel) is used for action selection.
    outputs = {
        "tmpl": {"logits": tmpl_logits, "action": acts[:, 0]},
        "action": acts[:, 0],
    }
    for i, s in enumerate(SLOT_NAMES):
        outputs[s] = {
            "logits": slot_logits[:, i],
            "mask": slot_mask[:, i],
            "action": acts[:, i + 1],
        }
    # TODO(synk): __update_template_masking_cache is stateful host-side Python
    # (dict keyed by obs string); not modeled here.
    return outputs, state


# ----------------------------- params ---------------------------------------
def init_params(key):
    ks = jax.random.split(key, 4)
    emb = jnp.zeros((V_PAD, E), jnp.float32).at[:V].set(
        jax.random.normal(ks[0], (V, E), jnp.float32) * 0.1)
    w_enc = jax.random.normal(ks[1], (E, H), jnp.float32) * 0.1
    # Pre-fused encoder: mean-pool scale (1/T) and emb @ w_enc folded into one
    # lane-dense (128, 128) matrix -> one fewer MXU pass per call.
    w_fused = (emb @ w_enc) * (1.0 / T)
    w_tmpl = jax.random.normal(ks[2], (H, N_TMPL), jnp.float32) * 0.1
    w_slot = jax.random.normal(ks[3], (H, SLOT_BLK), jnp.float32) * 0.1
    # fused head weight slab: [:, 0:16]=tmpl, [:, 16:128]=pad, [:, 128:256]=slots
    w_heads = jnp.zeros((H, N_OUT), jnp.float32)
    w_heads = w_heads.at[:, :N_TMPL].set(w_tmpl).at[:, TMPL_BLK:].set(w_slot)
    return {
        "w_fused": w_fused.astype(jnp.bfloat16),
        "b_enc": jnp.zeros((1, H), jnp.float32),
        "w_heads": w_heads.astype(jnp.bfloat16),
        "b_heads": jnp.zeros((1, N_OUT), jnp.float32),  # fused b_tmpl / b_slot slab
    }


if __name__ == "__main__":
    key = jax.random.PRNGKey(0)
    pkey, okey = jax.random.split(key)
    params = init_params(pkey)
    obs_tokens = jax.random.randint(okey, (B, T), 0, V, dtype=jnp.int32)

    outputs, state = jax.jit(agent_forward)(obs_tokens, params)
    jax.block_until_ready(state)
    jax.block_until_ready(outputs["tmpl"]["logits"])

    assert state.shape == (B, H)
    assert outputs["tmpl"]["logits"].shape == (B, N_TMPL)
    assert outputs["v"]["logits"].shape == (B, N_OBJ)
    assert outputs["tmpl"]["action"].shape == (B,)
    assert outputs["o2"]["mask"].shape == (B, N_OBJ)
    print("KERNEL_OK")
</pallas_src>

<mosaic_0001>
module attributes {stable_mosaic.version = 11 : i64} {
  func.func @agent_fused_kernel(%arg0: i32, %arg1: memref<8x8xi32, #tpu.memory_space<vmem>>, %arg2: memref<128x128xbf16, #tpu.memory_space<vmem>>, %arg3: memref<1x128xf32, #tpu.memory_space<vmem>>, %arg4: memref<128x256xbf16, #tpu.memory_space<vmem>>, %arg5: memref<1x256xf32, #tpu.memory_space<vmem>>, %arg6: memref<8x128xf32, #tpu.memory_space<vmem>>, %arg7: memref<8x128xf32, #tpu.memory_space<vmem>>, %arg8: memref<8x256xf32, #tpu.memory_space<vmem>>, %arg9: memref<8x128xf32, #tpu.memory_space<vmem>>, %arg10: memref<8x8xi32, #tpu.memory_space<vmem>>) attributes {dimension_semantics = [#tpu.dimension_semantics<parallel>], iteration_bounds = array<i64: 1>, scalar_prefetch = 0 : i64, scratch_operands = 0 : i64, tpu.core_type = #tpu.core_type<tc>, window_params = [{transform_indices = @transform_0, window_bounds = array<i64: 8, 8>}, {pipeline_mode = #tpu.pipeline_mode<synchronous>, transform_indices = @transform_1, window_bounds = array<i64: 128, 128>}, {pipeline_mode = #tpu.pipeline_mode<synchronous>, transform_indices = @transform_2, window_bounds = array<i64: 1, 128>}, {pipeline_mode = #tpu.pipeline_mode<synchronous>, transform_indices = @transform_3, window_bounds = array<i64: 128, 256>}, {pipeline_mode = #tpu.pipeline_mode<synchronous>, transform_indices = @transform_4, window_bounds = array<i64: 1, 256>}, {transform_indices = @transform_5, window_bounds = array<i64: 8, 128>}, {transform_indices = @transform_6, window_bounds = array<i64: 8, 128>}, {transform_indices = @transform_7, window_bounds = array<i64: 8, 256>}, {transform_indices = @transform_8, window_bounds = array<i64: 8, 128>}, {transform_indices = @transform_9, window_bounds = array<i64: 8, 8>}]} {
    %c0 = arith.constant 0 : index
    %c0_0 = arith.constant 0 : index
    %0 = vector.load %arg1[%c0, %c0_0] : memref<8x8xi32, #tpu.memory_space<vmem>>, vector<8x8xi32>
    %1 = tpu.iota {dimensions = array<i32: 1>} : vector<8x128xi32>
    %cst = arith.constant 0.000000e+00 : f32
    %2 = vector.broadcast %cst : f32 to vector<8x128xf32>
    %3 = vector.extract_strided_slice %0 {offsets = [0, 0], sizes = [8, 1], strides = [1, 1]} : vector<8x8xi32> to vector<8x1xi32>
    %4 = vector.broadcast %3 : vector<8x1xi32> to vector<8x128xi32>
    %5 = arith.cmpi eq, %1, %4 : vector<8x128xi32>
    %6 = arith.extui %5 : vector<8x128xi1> to vector<8x128xi32>
    %7 = arith.sitofp %6 : vector<8x128xi32> to vector<8x128xf32>
    %8 = arith.addf %2, %7 : vector<8x128xf32>
    %9 = vector.extract_strided_slice %0 {offsets = [0, 1], sizes = [8, 1], strides = [1, 1]} : vector<8x8xi32> to vector<8x1xi32>
    %10 = vector.broadcast %9 : vector<8x1xi32> to vector<8x128xi32>
    %11 = arith.cmpi eq, %1, %10 : vector<8x128xi32>
    %12 = arith.extui %11 : vector<8x128xi1> to vector<8x128xi32>
    %13 = arith.sitofp %12 : vector<8x128xi32> to vector<8x128xf32>
    %14 = arith.addf %8, %13 : vector<8x128xf32>
    %15 = vector.extract_strided_slice %0 {offsets = [0, 2], sizes = [8, 1], strides = [1, 1]} : vector<8x8xi32> to vector<8x1xi32>
    %16 = vector.broadcast %15 : vector<8x1xi32> to vector<8x128xi32>
    %17 = arith.cmpi eq, %1, %16 : vector<8x128xi32>
    %18 = arith.extui %17 : vector<8x128xi1> to vector<8x128xi32>
    %19 = arith.sitofp %18 : vector<8x128xi32> to vector<8x128xf32>
    %20 = arith.addf %14, %19 : vector<8x128xf32>
    %21 = vector.extract_strided_slice %0 {offsets = [0, 3], sizes = [8, 1], strides = [1, 1]} : vector<8x8xi32> to vector<8x1xi32>
    %22 = vector.broadcast %21 : vector<8x1xi32> to vector<8x128xi32>
    %23 = arith.cmpi eq, %1, %22 : vector<8x128xi32>
    %24 = arith.extui %23 : vector<8x128xi1> to vector<8x128xi32>
    %25 = arith.sitofp %24 : vector<8x128xi32> to vector<8x128xf32>
    %26 = arith.addf %20, %25 : vector<8x128xf32>
    %27 = vector.extract_strided_slice %0 {offsets = [0, 4], sizes = [8, 1], strides = [1, 1]} : vector<8x8xi32> to vector<8x1xi32>
    %28 = vector.broadcast %27 : vector<8x1xi32> to vector<8x128xi32>
    %29 = arith.cmpi eq, %1, %28 : vector<8x128xi32>
    %30 = arith.extui %29 : vector<8x128xi1> to vector<8x128xi32>
    %31 = arith.sitofp %30 : vector<8x128xi32> to vector<8x128xf32>
    %32 = arith.addf %26, %31 : vector<8x128xf32>
    %33 = vector.extract_strided_slice %0 {offsets = [0, 5], sizes = [8, 1], strides = [1, 1]} : vector<8x8xi32> to vector<8x1xi32>
    %34 = vector.broadcast %33 : vector<8x1xi32> to vector<8x128xi32>
    %35 = arith.cmpi eq, %1, %34 : vector<8x128xi32>
    %36 = arith.extui %35 : vector<8x128xi1> to vector<8x128xi32>
    %37 = arith.sitofp %36 : vector<8x128xi32> to vector<8x128xf32>
    %38 = arith.addf %32, %37 : vector<8x128xf32>
    %39 = vector.extract_strided_slice %0 {offsets = [0, 6], sizes = [8, 1], strides = [1, 1]} : vector<8x8xi32> to vector<8x1xi32>
    %40 = vector.broadcast %39 : vector<8x1xi32> to vector<8x128xi32>
    %41 = arith.cmpi eq, %1, %40 : vector<8x128xi32>
    %42 = arith.extui %41 : vector<8x128xi1> to vector<8x128xi32>
    %43 = arith.sitofp %42 : vector<8x128xi32> to vector<8x128xf32>
    %44 = arith.addf %38, %43 : vector<8x128xf32>
    %45 = vector.extract_strided_slice %0 {offsets = [0, 7], sizes = [8, 1], strides = [1, 1]} : vector<8x8xi32> to vector<8x1xi32>
    %46 = vector.broadcast %45 : vector<8x1xi32> to vector<8x128xi32>
    %47 = arith.cmpi eq, %1, %46 : vector<8x128xi32>
    %48 = arith.extui %47 : vector<8x128xi1> to vector<8x128xi32>
    %49 = arith.sitofp %48 : vector<8x128xi32> to vector<8x128xf32>
    %50 = arith.addf %44, %49 : vector<8x128xf32>
    %51 = arith.truncf %50 : vector<8x128xf32> to vector<8x128xbf16>
    %c0_1 = arith.constant 0 : index
    %c0_2 = arith.constant 0 : index
    %52 = vector.load %arg2[%c0_1, %c0_2] : memref<128x128xbf16, #tpu.memory_space<vmem>>, vector<128x128xbf16>
    %cst_3 = arith.constant dense<0.000000e+00> : vector<8x128xf32>
    %53 = tpu.matmul %51, %52, %cst_3 {dimension_numbers = #tpu.dot_dimension_numbers<[1], [0], [0], [1], [0, 0, 1, 1], [], []>} : vector<8x128xbf16>, vector<128x128xbf16>, vector<8x128xf32> -> vector<8x128xf32>
    %c0_4 = arith.constant 0 : index
    %c0_5 = arith.constant 0 : index
    %54 = vector.load %arg3[%c0_4, %c0_5] : memref<1x128xf32, #tpu.memory_space<vmem>>, vector<1x128xf32>
    %55 = vector.broadcast %54 : vector<1x128xf32> to vector<8x128xf32>
    %56 = arith.addf %53, %55 : vector<8x128xf32>
    %cst_6 = arith.constant 0.000000e+00 : f32
    %57 = vector.broadcast %cst_6 : f32 to vector<8x128xf32>
    %58 = arith.maximumf %56, %57 : vector<8x128xf32>
    %c0_7 = arith.constant 0 : index
    %c0_8 = arith.constant 0 : index
    %59 = vector.load %arg7[%c0_7, %c0_8] : memref<8x128xf32, #tpu.memory_space<vmem>>, vector<8x128xf32>
    tpu.vector_store %arg7[%c0_7, %c0_8], %58 {strides = array<i32>} : memref<8x128xf32, #tpu.memory_space<vmem>>, vector<8x128xf32>,
    %60 = arith.truncf %58 : vector<8x128xf32> to vector<8x128xbf16>
    %c0_9 = arith.constant 0 : index
    %c0_10 = arith.constant 0 : index
    %61 = vector.load %arg4[%c0_9, %c0_10] : memref<128x256xbf16, #tpu.memory_space<vmem>>, vector<128x256xbf16>
    %cst_11 = arith.constant dense<0.000000e+00> : vector<8x256xf32>
    %62 = tpu.matmul %60, %61, %cst_11 {dimension_numbers = #tpu.dot_dimension_numbers<[1], [0], [0], [1], [0, 0, 1, 1], [], []>} : vector<8x128xbf16>, vector<128x256xbf16>, vector<8x256xf32> -> vector<8x256xf32>
    %c0_12 = arith.constant 0 : index
    %c0_13 = arith.constant 0 : index
    %63 = vector.load %arg5[%c0_12, %c0_13] : memref<1x256xf32, #tpu.memory_space<vmem>>, vector<1x256xf32>
    %64 = vector.broadcast %63 : vector<1x256xf32> to vector<8x256xf32>
    %65 = arith.addf %62, %64 : vector<8x256xf32>
    %66 = vector.extract_strided_slice %65 {offsets = [0, 0], sizes = [8, 128], strides = [1, 1]} : vector<8x256xf32> to vector<8x128xf32>
    %c0_14 = arith.constant 0 : index
    %c0_15 = arith.constant 0 : index
    %67 = vector.load %arg6[%c0_14, %c0_15] : memref<8x128xf32, #tpu.memory_space<vmem>>, vector<8x128xf32>
    %cst_16 = arith.constant 1.000000e+00 : f32
    %68 = vector.broadcast %cst_16 : f32 to vector<8x128xf32>
    %69 = arith.subf %67, %68 : vector<8x128xf32>
    %cst_17 = arith.constant 1.000000e+09 : f32
    %70 = vector.broadcast %cst_17 : f32 to vector<8x128xf32>
    %71 = arith.mulf %69, %70 : vector<8x128xf32>
    %72 = arith.addf %66, %71 : vector<8x128xf32>
    %73 = vector.extract_strided_slice %65 {offsets = [0, 128], sizes = [8, 128], strides = [1, 1]} : vector<8x256xf32> to vector<8x128xf32>
    %74 = tpu.concatenate %72, %73 in 1 : vector<8x128xf32>, vector<8x128xf32> -> vector<8x256xf32>
    %c0_18 = arith.constant 0 : index
    %c0_19 = arith.constant 0 : index
    %75 = vector.load %arg8[%c0_18, %c0_19] : memref<8x256xf32, #tpu.memory_space<vmem>>, vector<8x256xf32>
    tpu.vector_store %arg8[%c0_18, %c0_19], %74 {strides = array<i32>} : memref<8x256xf32, #tpu.memory_space<vmem>>, vector<8x256xf32>,
    %cst_20 = arith.constant 0.000000e+00 : f32
    %76 = vector.broadcast %cst_20 : f32 to vector<8x128xf32>
    %77 = arith.cmpf ogt, %73, %76 : vector<8x128xf32>
    %78 = arith.extui %77 : vector<8x128xi1> to vector<8x128xi32>
    %79 = arith.sitofp %78 : vector<8x128xi32> to vector<8x128xf32>
    %c0_21 = arith.constant 0 : index
    %c0_22 = arith.constant 0 : index
    %80 = vector.load %arg9[%c0_21, %c0_22] : memref<8x128xf32, #tpu.memory_space<vmem>>, vector<8x128xf32>
    tpu.vector_store %arg9[%c0_21, %c0_22], %79 {strides = array<i32>} : memref<8x128xf32, #tpu.memory_space<vmem>>, vector<8x128xf32>,
    %cst_23 = arith.constant dense<0xFF800000> : vector<8xf32>
    %81 = vector.multi_reduction <maximumf>, %72, %cst_23 [1] : vector<8x128xf32> to vector<8xf32>
    %82 = vector.shape_cast %81 : vector<8xf32> to vector<8x1xf32>
    %83 = tpu.iota {dimensions = array<i32: 1>} : vector<8x128xi32>
    %84 = vector.broadcast %82 : vector<8x1xf32> to vector<8x128xf32>
    %85 = arith.cmpf oeq, %72, %84 : vector<8x128xf32>
    %c128_i32 = arith.constant 128 : i32
    %86 = vector.broadcast %c128_i32 : i32 to vector<8x128xi32>
    %87 = arith.select %85, %83, %86 : vector<8x128xi1>, vector<8x128xi32>
    %cst_24 = arith.constant dense<2147483647> : vector<8xi32>
    %88 = vector.multi_reduction <minsi>, %87, %cst_24 [1] : vector<8x128xi32> to vector<8xi32>
    %89 = vector.shape_cast %88 : vector<8xi32> to vector<8x1xi32>
    %90 = vector.extract_strided_slice %73 {offsets = [0, 0], sizes = [8, 32], strides = [1, 1]} : vector<8x128xf32> to vector<8x32xf32>
    %cst_25 = arith.constant dense<0xFF800000> : vector<8xf32>
    %91 = vector.multi_reduction <maximumf>, %90, %cst_25 [1] : vector<8x32xf32> to vector<8xf32>
    %92 = vector.shape_cast %91 : vector<8xf32> to vector<8x1xf32>
    %93 = tpu.iota {dimensions = array<i32: 1>} : vector<8x32xi32>
    %94 = vector.broadcast %92 : vector<8x1xf32> to vector<8x32xf32>
    %95 = arith.cmpf oeq, %90, %94 : vector<8x32xf32>
    %c32_i32 = arith.constant 32 : i32
    %96 = vector.broadcast %c32_i32 : i32 to vector<8x32xi32>
    %97 = arith.select %95, %93, %96 : vector<8x32xi1>, vector<8x32xi32>
    %cst_26 = arith.constant dense<2147483647> : vector<8xi32>
    %98 = vector.multi_reduction <minsi>, %97, %cst_26 [1] : vector<8x32xi32> to vector<8xi32>
    %99 = vector.shape_cast %98 : vector<8xi32> to vector<8x1xi32>
    %100 = vector.extract_strided_slice %73 {offsets = [0, 32], sizes = [8, 32], strides = [1, 1]} : vector<8x128xf32> to vector<8x32xf32>
    %cst_27 = arith.constant dense<0xFF800000> : vector<8xf32>
    %101 = vector.multi_reduction <maximumf>, %100, %cst_27 [1] : vector<8x32xf32> to vector<8xf32>
    %102 = vector.shape_cast %101 : vector<8xf32> to vector<8x1xf32>
    %103 = tpu.iota {dimensions = array<i32: 1>} : vector<8x32xi32>
    %104 = vector.broadcast %102 : vector<8x1xf32> to vector<8x32xf32>
    %105 = arith.cmpf oeq, %100, %104 : vector<8x32xf32>
    %c32_i32_28 = arith.constant 32 : i32
    %106 = vector.broadcast %c32_i32_28 : i32 to vector<8x32xi32>
    %107 = arith.select %105, %103, %106 : vector<8x32xi1>, vector<8x32xi32>
    %cst_29 = arith.constant dense<2147483647> : vector<8xi32>
    %108 = vector.multi_reduction <minsi>, %107, %cst_29 [1] : vector<8x32xi32> to vector<8xi32>
    %109 = vector.shape_cast %108 : vector<8xi32> to vector<8x1xi32>
    %110 = vector.extract_strided_slice %73 {offsets = [0, 64], sizes = [8, 32], strides = [1, 1]} : vector<8x128xf32> to vector<8x32xf32>
    %cst_30 = arith.constant dense<0xFF800000> : vector<8xf32>
    %111 = vector.multi_reduction <maximumf>, %110, %cst_30 [1] : vector<8x32xf32> to vector<8xf32>
    %112 = vector.shape_cast %111 : vector<8xf32> to vector<8x1xf32>
    %113 = tpu.iota {dimensions = array<i32: 1>} : vector<8x32xi32>
    %114 = vector.broadcast %112 : vector<8x1xf32> to vector<8x32xf32>
    %115 = arith.cmpf oeq, %110, %114 : vector<8x32xf32>
    %c32_i32_31 = arith.constant 32 : i32
    %116 = vector.broadcast %c32_i32_31 : i32 to vector<8x32xi32>
    %117 = arith.select %115, %113, %116 : vector<8x32xi1>, vector<8x32xi32>
    %cst_32 = arith.constant dense<2147483647> : vector<8xi32>
    %118 = vector.multi_reduction <minsi>, %117, %cst_32 [1] : vector<8x32xi32> to vector<8xi32>
    %119 = vector.shape_cast %118 : vector<8xi32> to vector<8x1xi32>
    %120 = vector.extract_strided_slice %73 {offsets = [0, 96], sizes = [8, 32], strides = [1, 1]} : vector<8x128xf32> to vector<8x32xf32>
    %cst_33 = arith.constant dense<0xFF800000> : vector<8xf32>
    %121 = vector.multi_reduction <maximumf>, %120, %cst_33 [1] : vector<8x32xf32> to vector<8xf32>
    %122 = vector.shape_cast %121 : vector<8xf32> to vector<8x1xf32>
    %123 = tpu.iota {dimensions = array<i32: 1>} : vector<8x32xi32>
    %124 = vector.broadcast %122 : vector<8x1xf32> to vector<8x32xf32>
    %125 = arith.cmpf oeq, %120, %124 : vector<8x32xf32>
    %c32_i32_34 = arith.constant 32 : i32
    %126 = vector.broadcast %c32_i32_34 : i32 to vector<8x32xi32>
    %127 = arith.select %125, %123, %126 : vector<8x32xi1>, vector<8x32xi32>
    %cst_35 = arith.constant dense<2147483647> : vector<8xi32>
    %128 = vector.multi_reduction <minsi>, %127, %cst_35 [1] : vector<8x32xi32> to vector<8xi32>
    %129 = vector.shape_cast %128 : vector<8xi32> to vector<8x1xi32>
    %130 = tpu.iota {dimensions = array<i32: 1>} : vector<8x8xi32>
    %c0_i32 = arith.constant 0 : i32
    %131 = vector.broadcast %c0_i32 : i32 to vector<8x8xi32>
    %c0_i32_36 = arith.constant 0 : i32
    %132 = vector.broadcast %c0_i32_36 : i32 to vector<8x8xi32>
    %133 = arith.cmpi eq, %130, %132 : vector<8x8xi32>
    %134 = vector.shape_cast %89 : vector<8x1xi32> to vector<8x1xi32>
    %135 = vector.broadcast %134 : vector<8x1xi32> to vector<8x8xi32>
    %136 = arith.select %133, %135, %131 : vector<8x8xi1>, vector<8x8xi32>
    %c1_i32 = arith.constant 1 : i32
    %137 = vector.broadcast %c1_i32 : i32 to vector<8x8xi32>
    %138 = arith.cmpi eq, %130, %137 : vector<8x8xi32>
    %139 = vector.shape_cast %99 : vector<8x1xi32> to vector<8x1xi32>
    %140 = vector.broadcast %139 : vector<8x1xi32> to vector<8x8xi32>
    %141 = arith.select %138, %140, %136 : vector<8x8xi1>, vector<8x8xi32>
    %c2_i32 = arith.constant 2 : i32
    %142 = vector.broadcast %c2_i32 : i32 to vector<8x8xi32>
    %143 = arith.cmpi eq, %130, %142 : vector<8x8xi32>
    %144 = vector.shape_cast %109 : vector<8x1xi32> to vector<8x1xi32>
    %145 = vector.broadcast %144 : vector<8x1xi32> to vector<8x8xi32>
    %146 = arith.select %143, %145, %141 : vector<8x8xi1>, vector<8x8xi32>
    %c3_i32 = arith.constant 3 : i32
    %147 = vector.broadcast %c3_i32 : i32 to vector<8x8xi32>
    %148 = arith.cmpi eq, %130, %147 : vector<8x8xi32>
    %149 = vector.shape_cast %119 : vector<8x1xi32> to vector<8x1xi32>
    %150 = vector.broadcast %149 : vector<8x1xi32> to vector<8x8xi32>
    %151 = arith.select %148, %150, %146 : vector<8x8xi1>, vector<8x8xi32>
    %c4_i32 = arith.constant 4 : i32
    %152 = vector.broadcast %c4_i32 : i32 to vector<8x8xi32>
    %153 = arith.cmpi eq, %130, %152 : vector<8x8xi32>
    %154 = vector.shape_cast %129 : vector<8x1xi32> to vector<8x1xi32>
    %155 = vector.broadcast %154 : vector<8x1xi32> to vector<8x8xi32>
    %156 = arith.select %153, %155, %151 : vector<8x8xi1>, vector<8x8xi32>
    %c0_37 = arith.constant 0 : index
    %c0_38 = arith.constant 0 : index
    %157 = vector.load %arg10[%c0_37, %c0_38] : memref<8x8xi32, #tpu.memory_space<vmem>>, vector<8x8xi32>
    tpu.vector_store %arg10[%c0_37, %c0_38], %156 {strides = array<i32>} : memref<8x8xi32, #tpu.memory_space<vmem>>, vector<8x8xi32>,
    return
  }
  func.func @transform_0(%arg0: i32) -> (i32, i32) {
    %c0_i32 = arith.constant 0 : i32
    %c0_i32_0 = arith.constant 0 : i32
    return %arg0, %c0_i32 : i32, i32
  }
  func.func @transform_1(%arg0: i32) -> (i32, i32) {
    %c0_i32 = arith.constant 0 : i32
    %c0_i32_0 = arith.constant 0 : i32
    %c0_i32_1 = arith.constant 0 : i32
    return %c0_i32, %c0_i32_0 : i32, i32
  }
  func.func @transform_2(%arg0: i32) -> (i32, i32) {
    %c0_i32 = arith.constant 0 : i32
    %c0_i32_0 = arith.constant 0 : i32
    %c0_i32_1 = arith.constant 0 : i32
    return %c0_i32, %c0_i32_0 : i32, i32
  }
  func.func @transform_3(%arg0: i32) -> (i32, i32) {
    %c0_i32 = arith.constant 0 : i32
    %c0_i32_0 = arith.constant 0 : i32
    %c0_i32_1 = arith.constant 0 : i32
    return %c0_i32, %c0_i32_0 : i32, i32
  }
  func.func @transform_4(%arg0: i32) -> (i32, i32) {
    %c0_i32 = arith.constant 0 : i32
    %c0_i32_0 = arith.constant 0 : i32
    %c0_i32_1 = arith.constant 0 : i32
    return %c0_i32, %c0_i32_0 : i32, i32
  }
  func.func @transform_5(%arg0: i32) -> (i32, i32) {
    %c0_i32 = arith.constant 0 : i32
    %c0_i32_0 = arith.constant 0 : i32
    return %arg0, %c0_i32 : i32, i32
  }
  func.func @transform_6(%arg0: i32) -> (i32, i32) {
    %c0_i32 = arith.constant 0 : i32
    %c0_i32_0 = arith.constant 0 : i32
    return %arg0, %c0_i32 : i32, i32
  }
  func.func @transform_7(%arg0: i32) -> (i32, i32) {
    %c0_i32 = arith.constant 0 : i32
    %c0_i32_0 = arith.constant 0 : i32
    return %arg0, %c0_i32 : i32, i32
  }
  func.func @transform_8(%arg0: i32) -> (i32, i32) {
    %c0_i32 = arith.constant 0 : i32
    %c0_i32_0 = arith.constant 0 : i32
    return %arg0, %c0_i32 : i32, i32
  }
  func.func @transform_9(%arg0: i32) -> (i32, i32) {
    %c0_i32 = arith.constant 0 : i32
    %c0_i32_0 = arith.constant 0 : i32
    return %arg0, %c0_i32 : i32, i32
  }
}

</mosaic_0001>

<llo_original>
// kernel: agent_forward.1
$region0: #{agent_forward.1}
  #allocation0 [shape = 'u32[]', space=smem, size = 0x4, offset = 0x4, fixed_abs, tag = 'smem constant byte address 0x4 - core index']
  #allocation1 [shape = 'u32[144,128]{1,0:T(1,128)}', space=vmem, size = 0x12000, scoped, tag = 'internal scratch']
  %s0 = inlined_call_operand.vmem [shape: s32[8,8], index: 0, kind: input, shape index: {}]
  %s1 = inlined_call_operand.hbm [shape: bf16[128,128], index: 1, kind: input, shape index: {}]
  %s2 = inlined_call_operand.vmem [shape: f32[1,128], index: 2, kind: input, shape index: {}]
  %s3 = inlined_call_operand.hbm [shape: bf16[128,256], index: 3, kind: input, shape index: {}]
  %s4 = inlined_call_operand.vmem [shape: f32[1,256], index: 4, kind: input, shape index: {}]
  %s5 = inlined_call_operand.vmem [shape: f32[8,128], index: 5, kind: input, shape index: {}]
  %s6 = inlined_call_operand.vmem [shape: f32[8,128], index: 6, kind: output, shape index: {0}]
  %s7 = inlined_call_operand.vmem [shape: f32[8,256], index: 7, kind: output, shape index: {1}]
  %s8 = inlined_call_operand.vmem [shape: f32[8,128], index: 8, kind: output, shape index: {2}]
  %s9 = inlined_call_operand.vmem [shape: s32[8,8], index: 9, kind: output, shape index: {3}]
  %10 = xla_tuple %s6, %s7, %s8, %s9
  %s11 = sld [smem:[#allocation0]]
  $region66: #{agent_forward.1} parent=0
    _
  %s13 = ssub.s32 1, %s11
  %s14 = scalar_select 0, %s13, %s11
  $region1: #{agent_forward.1} parent=0
    #allocation2 [shape = 'u8[32768]{0}', space=vmem, size = 0x8000, scoped, tag = 'input window, operand 1, single buffered']
    #allocation3 [shape = 's32[1]{0}', space=sflag, size = 0x4, scoped, tag = 'scoped memory for agent_forward.1']
    #allocation4 [shape = 'u8[65536]{0}', space=vmem, size = 0x10000, scoped, tag = 'input window, operand 3, single buffered']
    #allocation5 [shape = 's32[1]{0}', space=sflag, size = 0x4, scoped, tag = 'scoped memory for agent_forward.1']
    %15 = vsyncpa [#allocation3], 0
    %16 = vsyncpa [#allocation5], 0
    // Predicated region
    $region2: #{agent_forward.1} parent=1 // pred_check
      _
    $region3: #{agent_forward.1} parent=1 // pred_check_branch
      %18 = sbr.rel (0) target = $region5
    $region4: #{agent_forward.1} parent=1 // pred_region
      _
    $region5: #{agent_forward.1} parent=1 // pred_fallthru
      _
    // Predicated region
    $region6: #{agent_forward.1} parent=1 // pred_check
      _
    $region7: #{agent_forward.1} parent=1 // pred_check_branch
      %20 = sbr.rel (0) target = $region9
    $region8: #{agent_forward.1} parent=1 // pred_region
      %s22 = ssub.s32 1024, 1024
      %23 = vsyncadd [#allocation3], %s22
      %s24 = sshll.u32 [#allocation2], 4
      %s25 = int_to_ptr.vmem [resolvable:$true] %s24
      %30 = dma.hbm_to_vmem [thread:$0]  %s1, 1024, %s25, [#allocation3], 64, 64, 4
    $region9: #{agent_forward.1} parent=1 // pred_fallthru
      _
    // Predicated region
    $region10: #{agent_forward.1} parent=1 // pred_check
      _
    $region11: #{agent_forward.1} parent=1 // pred_check_branch
      %32 = sbr.rel (0) target = $region13
    $region12: #{agent_forward.1} parent=1 // pred_region
      _
    $region13: #{agent_forward.1} parent=1 // pred_fallthru
      _
    // Predicated region
    $region14: #{agent_forward.1} parent=1 // pred_check
      _
    $region15: #{agent_forward.1} parent=1 // pred_check_branch
      %34 = sbr.rel (0) target = $region17
    $region16: #{agent_forward.1} parent=1 // pred_region
      %s36 = ssub.s32 2048, 2048
      %37 = vsyncadd [#allocation5], %s36
      %s38 = sshll.u32 [#allocation4], 4
      %s39 = int_to_ptr.vmem [resolvable:$true] %s38
      %44 = dma.hbm_to_vmem [thread:$0]  %s3, 2048, %s39, [#allocation5], 128, 128, 8
    $region17: #{agent_forward.1} parent=1 // pred_fallthru
      _
    // Predicated region
    $region18: #{agent_forward.1} parent=1 // pred_check
      _
    $region19: #{agent_forward.1} parent=1 // pred_check_branch
      %46 = sbr.rel (0) target = $region21
    $region20: #{agent_forward.1} parent=1 // pred_region
      _
    $region21: #{agent_forward.1} parent=1 // pred_fallthru
      _
    // Predicated region
    $region22: #{agent_forward.1} parent=1 // pred_check
      _
    $region23: #{agent_forward.1} parent=1 // pred_check_branch
      %48 = sbr.rel (0) target = $region25
    $region24: #{agent_forward.1} parent=1 // pred_region
      _
    $region25: #{agent_forward.1} parent=1 // pred_fallthru
      _
    // Predicated region
    $region26: #{agent_forward.1} parent=1 // pred_check
      _
    $region27: #{agent_forward.1} parent=1 // pred_check_branch
      %50 = sbr.rel (0) target = $region29
    $region28: #{agent_forward.1} parent=1 // pred_region
      %51 = dma.done [#allocation3], 1024
    $region29: #{agent_forward.1} parent=1 // pred_fallthru
      _
    // Predicated region
    $region30: #{agent_forward.1} parent=1 // pred_check
      _
    $region31: #{agent_forward.1} parent=1 // pred_check_branch
      %53 = sbr.rel (0) target = $region33
    $region32: #{agent_forward.1} parent=1 // pred_region
      %54 = dma.done [#allocation5], 2048
    $region33: #{agent_forward.1} parent=1 // pred_fallthru
      _
    %v56 = vld [vmem:[%s0] sm:$0xff]
    %v57 = vlaneseq
    %v58 = vand.u32 %v57, 127
    %59 = vset.pattern.permute.xlu0 0
    %60 = vperm.xlu0 %59, %v56
    %v61 = vpop.permute.xlu0 %60
    %vm62 = vcmp.eq.s32.totalorder %v58, %v61
    %v63 = vsel %vm62, 1, 0
    %v64 = vcvt.s32.f32 %v63
    %v65 = vadd.f32 %v64, 0.0
    %66 = vset.pattern.permute.xlu0 1
    %67 = vperm.xlu0 %66, %v56
    %v68 = vpop.permute.xlu0 %67
    %vm69 = vcmp.eq.s32.totalorder %v58, %v68
    %v70 = vsel %vm69, 1, 0
    %v71 = vcvt.s32.f32 %v70
    %v72 = vadd.f32 %v65, %v71
    %73 = vset.pattern.permute.xlu0 2
    %74 = vperm.xlu0 %73, %v56
    %v75 = vpop.permute.xlu0 %74
    %vm76 = vcmp.eq.s32.totalorder %v58, %v75
    %v77 = vsel %vm76, 1, 0
    %v78 = vcvt.s32.f32 %v77
    %v79 = vadd.f32 %v72, %v78
    %80 = vset.pattern.permute.xlu0 3
    %81 = vperm.xlu0 %80, %v56
    %v82 = vpop.permute.xlu0 %81
    %vm83 = vcmp.eq.s32.totalorder %v58, %v82
    %v84 = vsel %vm83, 1, 0
    %v85 = vcvt.s32.f32 %v84
    %v86 = vadd.f32 %v79, %v85
    %87 = vset.pattern.permute.xlu0 4
    %88 = vperm.xlu0 %87, %v56
    %v89 = vpop.permute.xlu0 %88
    %vm90 = vcmp.eq.s32.totalorder %v58, %v89
    %v91 = vsel %vm90, 1, 0
    %v92 = vcvt.s32.f32 %v91
    %v93 = vadd.f32 %v86, %v92
    %94 = vset.pattern.permute.xlu0 5
    %95 = vperm.xlu0 %94, %v56
    %v96 = vpop.permute.xlu0 %95
    %vm97 = vcmp.eq.s32.totalorder %v58, %v96
    %v98 = vsel %vm97, 1, 0
    %v99 = vcvt.s32.f32 %v98
    %v100 = vadd.f32 %v93, %v99
    %101 = vset.pattern.permute.xlu0 6
    %102 = vperm.xlu0 %101, %v56
    %v103 = vpop.permute.xlu0 %102
    %vm104 = vcmp.eq.s32.totalorder %v58, %v103
    %v105 = vsel %vm104, 1, 0
    %v106 = vcvt.s32.f32 %v105
    %v107 = vadd.f32 %v100, %v106
    %108 = vset.pattern.permute.xlu0 7
    %109 = vperm.xlu0 %108, %v56
    %v110 = vpop.permute.xlu0 %109
    %vm111 = vcmp.eq.s32.totalorder %v58, %v110
    %v112 = vsel %vm111, 1, 0
    %v113 = vcvt.s32.f32 %v112
    %v114 = vadd.f32 %v107, %v113
    %v115 = vpack.c.bf16 %v114, %v114
    %v116 = vld [vmem:[#allocation2] sm:$0xf]
    %v117 = vld [vmem:[#allocation2 + $0x4] sm:$0xf]
    %v118 = vld [vmem:[#allocation2 + $0x8] sm:$0xf]
    %v119 = vld [vmem:[#allocation2 + $0xc] sm:$0xf]
    %v120 = vld [vmem:[#allocation2 + $0x10] sm:$0xf]
    %v121 = vld [vmem:[#allocation2 + $0x14] sm:$0xf]
    %v122 = vld [vmem:[#allocation2 + $0x18] sm:$0xf]
    %v123 = vld [vmem:[#allocation2 + $0x1c] sm:$0xf]
    %v124 = vld [vmem:[#allocation2 + $0x20] sm:$0xf]
    %v125 = vld [vmem:[#allocation2 + $0x24] sm:$0xf]
    %v126 = vld [vmem:[#allocation2 + $0x28] sm:$0xf]
    %v127 = vld [vmem:[#allocation2 + $0x2c] sm:$0xf]
    %v128 = vld [vmem:[#allocation2 + $0x30] sm:$0xf]
    %v129 = vld [vmem:[#allocation2 + $0x34] sm:$0xf]
    %v130 = vld [vmem:[#allocation2 + $0x38] sm:$0xf]
    %v131 = vld [vmem:[#allocation2 + $0x3c] sm:$0xf]
    %v132 = vld [vmem:[%s2] sm:$0x1]
    %v134 = vlaneseq
    %v135 = vshrl.u32 %v134, 7
    %v136 = vsub.s32 0, %v135
    %v137 = vrot.slane %v132, %v136
    %v155 = vunpack.c.l.b16 %v116
    %v156 = vunpack.c.l.b16 %v117
    %v157 = vunpack.c.l.b16 %v118
    %v158 = vunpack.c.l.b16 %v119
    %v159 = vunpack.c.l.b16 %v120
    %v160 = vunpack.c.l.b16 %v121
    %v161 = vunpack.c.l.b16 %v122
    %v162 = vunpack.c.l.b16 %v123
    %v163 = vunpack.c.l.b16 %v124
    %v164 = vunpack.c.l.b16 %v125
    %v165 = vunpack.c.l.b16 %v126
    %v166 = vunpack.c.l.b16 %v127
    %v167 = vunpack.c.l.b16 %v128
    %v168 = vunpack.c.l.b16 %v129
    %v169 = vunpack.c.l.b16 %v130
    %v170 = vunpack.c.l.b16 %v131
    %v171 = vpack.c.b16 %v156, %v155
    %v172 = vpack.c.b16 %v158, %v157
    %v173 = vpack.c.b16 %v160, %v159
    %v174 = vpack.c.b16 %v162, %v161
    %v175 = vpack.c.b16 %v164, %v163
    %v176 = vpack.c.b16 %v166, %v165
    %v177 = vpack.c.b16 %v168, %v167
    %v178 = vpack.c.b16 %v170, %v169
    %187 = vmatprep.subr.bf16.mxu0 0
    %188 = vmatpush1.bf16.msra.mxu0 %v171
    %189 = vmatprep.subr.bf16.mxu0 0
    %190 = vmatpush1.bf16.msra.mxu0 %v172
    %191 = vmatprep.subr.bf16.mxu0 0
    %192 = vmatpush1.bf16.msra.mxu0 %v173
    %193 = vmatprep.subr.bf16.mxu0 0
    %194 = vmatpush1.bf16.msra.mxu0 %v174
    %195 = vmatprep.subr.bf16.mxu0 0
    %196 = vmatpush1.bf16.msra.mxu0 %v175
    %197 = vmatprep.subr.bf16.mxu0 0
    %198 = vmatpush1.bf16.msra.mxu0 %v176
    %199 = vmatprep.subr.bf16.mxu0 0
    %200 = vmatpush1.bf16.msra.mxu0 %v177
    %201 = vmatprep.subr.bf16.mxu0 0
    %202 = vmatpush1.bf16.msra.mxu0 %v178
    %203 = vmatprep.subr.bf16.mxu0 0
    %204 = vmatpush1.bf16.msra.mxu0 0
    %205 = vmatprep.subr.bf16.mxu0 0
    %206 = vmatpush1.bf16.msra.mxu0 0
    %207 = vmatprep.subr.bf16.mxu0 0
    %208 = vmatpush1.bf16.msra.mxu0 0
    %209 = vmatprep.subr.bf16.mxu0 0
    %210 = vmatpush1.bf16.msra.mxu0 0
    %211 = vmatprep.subr.bf16.mxu0 0
    %212 = vmatpush1.bf16.msra.mxu0 0
    %213 = vmatprep.subr.bf16.mxu0 0
    %214 = vmatpush1.bf16.msra.mxu0 0
    %215 = vmatprep.subr.bf16.mxu0 0
    %216 = vmatpush1.bf16.msra.mxu0 0
    %217 = vmatprep.subr.bf16.mxu0 0
    %218 = vmatpush1.bf16.msra.mxu0 0
    %219 = vmatprep.mubr.bf16.mxu0 0
    %220 = vmatmul.mubr.bf16.gmra.mrb[0].mxu0 %v115
    %v221 = vpop.f32.mrb[0].mxu0
    %v222 = vadd.f32 %v137, %v221
    %v223 = vpop.f32.mrb[0].mxu0
    %v224 = vpop.f32.mrb[0].mxu0
    %v225 = vpop.f32.mrb[0].mxu0
    %226 = vdwg.mxu0
    %v227 = vmax.f32 %v222, 0.0
    %228 = vst [vmem:[%s6] sm:$0xff] %v227
    %v229 = vpack.c.bf16 %v227, %v227
    %v230 = vld [vmem:[#allocation4] sm:$0xff]
    %v231 = vld [vmem:[#allocation4 + $0x8] sm:$0xff]
    %v232 = vld [vmem:[#allocation4 + $0x10] sm:$0xff]
    %v233 = vld [vmem:[#allocation4 + $0x18] sm:$0xff]
    %v234 = vld [vmem:[#allocation4 + $0x20] sm:$0xff]
    %v235 = vld [vmem:[#allocation4 + $0x28] sm:$0xff]
    %v236 = vld [vmem:[#allocation4 + $0x30] sm:$0xff]
    %v237 = vld [vmem:[#allocation4 + $0x38] sm:$0xff]
    %v238 = vld [vmem:[#allocation4 + $0x40] sm:$0xff]
    %v239 = vld [vmem:[#allocation4 + $0x48] sm:$0xff]
    %v240 = vld [vmem:[#allocation4 + $0x50] sm:$0xff]
    %v241 = vld [vmem:[#allocation4 + $0x58] sm:$0xff]
    %v242 = vld [vmem:[#allocation4 + $0x60] sm:$0xff]
    %v243 = vld [vmem:[#allocation4 + $0x68] sm:$0xff]
    %v244 = vld [vmem:[#allocation4 + $0x70] sm:$0xff]
    %v245 = vld [vmem:[#allocation4 + $0x78] sm:$0xff]
    %v246 = vld [vmem:[%s4] sm:$0x3]
    %v248 = vlaneseq
    %v249 = vshrl.u32 %v248, 7
    %v250 = vsub.s32 0, %v249
    %v251 = vrot.slane %v246, %v250
    %v252 = vlaneseq
    %v253 = vshrl.u32 %v252, 7
    %v254 = vsub.s32 1, %v253
    %v255 = vrot.slane %v246, %v254
    %v274 = vunpack.c.l.b16 %v230
    %v275 = vunpack.c.h.b16 %v230
    %v276 = vunpack.c.l.b16 %v231
    %v277 = vunpack.c.h.b16 %v231
    %v278 = vunpack.c.l.b16 %v232
    %v279 = vunpack.c.h.b16 %v232
    %v280 = vunpack.c.l.b16 %v233
    %v281 = vunpack.c.h.b16 %v233
    %v282 = vunpack.c.l.b16 %v234
    %v283 = vunpack.c.h.b16 %v234
    %v284 = vunpack.c.l.b16 %v235
    %v285 = vunpack.c.h.b16 %v235
    %v286 = vunpack.c.l.b16 %v236
    %v287 = vunpack.c.h.b16 %v236
    %v288 = vunpack.c.l.b16 %v237
    %v289 = vunpack.c.h.b16 %v237
    %v290 = vunpack.c.l.b16 %v238
    %v291 = vunpack.c.h.b16 %v238
    %v292 = vunpack.c.l.b16 %v239
    %v293 = vunpack.c.h.b16 %v239
    %v294 = vunpack.c.l.b16 %v240
    %v295 = vunpack.c.h.b16 %v240
    %v296 = vunpack.c.l.b16 %v241
    %v297 = vunpack.c.h.b16 %v241
    %v298 = vunpack.c.l.b16 %v242
    %v299 = vunpack.c.h.b16 %v242
    %v300 = vunpack.c.l.b16 %v243
    %v301 = vunpack.c.h.b16 %v243
    %v302 = vunpack.c.l.b16 %v244
    %v303 = vunpack.c.h.b16 %v244
    %v304 = vunpack.c.l.b16 %v245
    %v305 = vunpack.c.h.b16 %v245
    %v306 = vpack.c.b16 %v276, %v274
    %v307 = vpack.c.b16 %v277, %v275
    %v308 = vpack.c.b16 %v280, %v278
    %v309 = vpack.c.b16 %v281, %v279
    %v310 = vpack.c.b16 %v284, %v282
    %v311 = vpack.c.b16 %v285, %v283
    %v312 = vpack.c.b16 %v288, %v286
    %v313 = vpack.c.b16 %v289, %v287
    %v314 = vpack.c.b16 %v292, %v290
    %v315 = vpack.c.b16 %v293, %v291
    %v316 = vpack.c.b16 %v296, %v294
    %v317 = vpack.c.b16 %v297, %v295
    %v318 = vpack.c.b16 %v300, %v298
    %v319 = vpack.c.b16 %v301, %v299
    %v320 = vpack.c.b16 %v304, %v302
    %v321 = vpack.c.b16 %v305, %v303
    %338 = vmatprep.subr.bf16.mxu0 %v307
    %339 = vmatpush1.bf16.msra.mxu0 %v306
    %340 = vmatprep.subr.bf16.mxu0 %v309
    %341 = vmatpush1.bf16.msra.mxu0 %v308
    %342 = vmatprep.subr.bf16.mxu0 %v311
    %343 = vmatpush1.bf16.msra.mxu0 %v310
    %344 = vmatprep.subr.bf16.mxu0 %v313
    %345 = vmatpush1.bf16.msra.mxu0 %v312
    %346 = vmatprep.subr.bf16.mxu0 %v315
    %347 = vmatpush1.bf16.msra.mxu0 %v314
    %348 = vmatprep.subr.bf16.mxu0 %v317
    %349 = vmatpush1.bf16.msra.mxu0 %v316
    %350 = vmatprep.subr.bf16.mxu0 %v319
    %351 = vmatpush1.bf16.msra.mxu0 %v318
    %352 = vmatprep.subr.bf16.mxu0 %v321
    %353 = vmatpush1.bf16.msra.mxu0 %v320
    %354 = vmatprep.subr.bf16.mxu0 0
    %355 = vmatpush1.bf16.msra.mxu0 0
    %356 = vmatprep.subr.bf16.mxu0 0
    %357 = vmatpush1.bf16.msra.mxu0 0
    %358 = vmatprep.subr.bf16.mxu0 0
    %359 = vmatpush1.bf16.msra.mxu0 0
    %360 = vmatprep.subr.bf16.mxu0 0
    %361 = vmatpush1.bf16.msra.mxu0 0
    %362 = vmatprep.subr.bf16.mxu0 0
    %363 = vmatpush1.bf16.msra.mxu0 0
    %364 = vmatprep.subr.bf16.mxu0 0
    %365 = vmatpush1.bf16.msra.mxu0 0
    %366 = vmatprep.subr.bf16.mxu0 0
    %367 = vmatpush1.bf16.msra.mxu0 0
    %368 = vmatprep.subr.bf16.mxu0 0
    %369 = vmatpush1.bf16.msra.mxu0 0
    %370 = vmatprep.mubr.bf16.mxu0 0
    %371 = vmatmul.mubr.bf16.gmra.mrb[0].mxu0 %v229
    %v372 = vpop.f32.mrb[0].mxu0
    %v373 = vadd.f32 %v251, %v372
    %v374 = vpop.f32.mrb[0].mxu0
    %v375 = vadd.f32 %v255, %v374
    %v376 = vpop.f32.mrb[0].mxu0
    %v377 = vpop.f32.mrb[0].mxu0
    %378 = vdwg.mxu0
    %v379 = vld [vmem:[%s5] sm:$0xff]
    %v380 = vsub.f32 %v379, 1.0
    %v381 = vmul.f32 %v380, 1e+09
    %v382 = vadd.f32 %v373, %v381
    %383 = vst [vmem:[%s7] sm:$0xff] %v382
    %384 = vst [vmem:[%s7 + $0x8] sm:$0xff] %v375
    %vm385 = vcmp.gt.f32.partialorder %v375, 0.0
    %v386 = vsel %vm385, 1, 0
    %v387 = vcvt.s32.f32 %v386
    %388 = vst [vmem:[%s8] sm:$0xff] %v387
    %389 = vmax.xlane.f32.xlu0 %v382
    %v390 = vpop.xlane.xlu0 %389
    %vm391 = vcmp.eq.f32.partialorder %v382, %v390
    %v392 = vsel %vm391, %v58, 128
    %v393 = vand.u32 %v392, 65535
    %v394 = vshra.s32 %v392, 16
    %v395 = vcvt.s32.f32 %v393
    %v396 = vcvt.s32.f32 %v394
    %397 = vmin.xlane.f32.xlu0 %v396
    %v398 = vpop.xlane.xlu0 %397
    %vm399 = vcmp.eq.f32.partialorder %v396, %v398
    %v400 = vsel %vm399, %v395, inf
    %401 = vmin.xlane.f32.xlu0 %v400
    %v402 = vpop.xlane.xlu0 %401
    %v403 = vcvt.f32.s32 %v402
    %v404 = vcvt.f32.s32 %v398
    %v405 = vshll.u32 %v404, 16
    %v406 = vadd.s32 %v405, %v403
    %vm407 = vcmask 261120
    %v408 = vsel %vm407, %v375, -inf
    %409 = vmax.xlane.f32.xlu0 %v408
    %v410 = vpop.xlane.xlu0 %409
    %vm411 = vcmp.eq.f32.partialorder %v375, %v410
    %v412 = vsel %vm411, %v58, 32
    %v413 = vsel %vm407, %v412, 2147483647
    %v414 = vand.u32 %v413, 65535
    %v415 = vshra.s32 %v413, 16
    %v416 = vcvt.s32.f32 %v414
    %v417 = vcvt.s32.f32 %v415
    %418 = vmin.xlane.f32.xlu0 %v417
    %v419 = vpop.xlane.xlu0 %418
    %vm420 = vcmp.eq.f32.partialorder %v417, %v419
    %v421 = vsel %vm420, %v416, inf
    %422 = vmin.xlane.f32.xlu0 %v421
    %v423 = vpop.xlane.xlu0 %422
    %v424 = vcvt.f32.s32 %v423
    %v425 = vcvt.f32.s32 %v419
    %v426 = vshll.u32 %v425, 16
    %v427 = vadd.s32 %v426, %v424
    %vm428 = vcmask 523520
    %v429 = vsel %vm428, %v375, -inf
    %430 = vmax.xlane.f32.xlu0 %v429
    %v431 = vpop.xlane.xlu0 %430
    %vm432 = vcmp.eq.f32.partialorder %v375, %v431
    %433 = vrot.lane.b32.xlu0 %v58, 32
    %v434 = vpop.permute.xlu0 %433
    %v435 = vsel %vm432, %v434, 32
    %v436 = vsel %vm428, %v435, 2147483647
    %v437 = vand.u32 %v436, 65535
    %v438 = vshra.s32 %v436, 16
    %v439 = vcvt.s32.f32 %v437
    %v440 = vcvt.s32.f32 %v438
    %441 = vmin.xlane.f32.xlu0 %v440
    %v442 = vpop.xlane.xlu0 %441
    %vm443 = vcmp.eq.f32.partialorder %v440, %v442
    %v444 = vsel %vm443, %v439, inf
    %445 = vmin.xlane.f32.xlu0 %v444
    %v446 = vpop.xlane.xlu0 %445
    %v447 = vcvt.f32.s32 %v446
    %v448 = vcvt.f32.s32 %v442
    %v449 = vshll.u32 %v448, 16
    %v450 = vadd.s32 %v449, %v447
    %vm451 = vcmask 785920
    %v452 = vsel %vm451, %v375, -inf
    %453 = vmax.xlane.f32.xlu0 %v452
    %v454 = vpop.xlane.xlu0 %453
    %vm455 = vcmp.eq.f32.partialorder %v375, %v454
    %456 = vrot.lane.b32.xlu0 %v58, 64
    %v457 = vpop.permute.xlu0 %456
    %v458 = vsel %vm455, %v457, 32
    %v459 = vsel %vm451, %v458, 2147483647
    %v460 = vand.u32 %v459, 65535
    %v461 = vshra.s32 %v459, 16
    %v462 = vcvt.s32.f32 %v460
    %v463 = vcvt.s32.f32 %v461
    %464 = vmin.xlane.f32.xlu0 %v463
    %v465 = vpop.xlane.xlu0 %464
    %vm466 = vcmp.eq.f32.partialorder %v463, %v465
    %v467 = vsel %vm466, %v462, inf
    %468 = vmin.xlane.f32.xlu0 %v467
    %v469 = vpop.xlane.xlu0 %468
    %v470 = vcvt.f32.s32 %v469
    %v471 = vcvt.f32.s32 %v465
    %v472 = vshll.u32 %v471, 16
    %v473 = vadd.s32 %v472, %v470
    %vm474 = vcmask 1048320
    %v475 = vsel %vm474, %v375, -inf
    %476 = vmax.xlane.f32.xlu0 %v475
    %v477 = vpop.xlane.xlu0 %476
    %vm478 = vcmp.eq.f32.partialorder %v375, %v477
    %479 = vrot.lane.b32.xlu0 %v58, 96
    %v480 = vpop.permute.xlu0 %479
    %v481 = vsel %vm478, %v480, 32
    %v482 = vsel %vm474, %v481, 2147483647
    %v483 = vand.u32 %v482, 65535
    %v484 = vshra.s32 %v482, 16
    %v485 = vcvt.s32.f32 %v483
    %v486 = vcvt.s32.f32 %v484
    %487 = vmin.xlane.f32.xlu0 %v486
    %v488 = vpop.xlane.xlu0 %487
    %vm489 = vcmp.eq.f32.partialorder %v486, %v488
    %v490 = vsel %vm489, %v485, inf
    %491 = vmin.xlane.f32.xlu0 %v490
    %v492 = vpop.xlane.xlu0 %491
    %v493 = vcvt.f32.s32 %v492
    %v494 = vcvt.f32.s32 %v488
    %v495 = vshll.u32 %v494, 16
    %v496 = vadd.s32 %v495, %v493
    %vm497 = vcmp.eq.s32.totalorder %v58, 0
    %v498 = vsel %vm497, %v406, 0
    %vm499 = vcmp.eq.s32.totalorder %v58, 1
    %v500 = vsel %vm499, %v427, %v498
    %vm501 = vcmp.eq.s32.totalorder %v58, 2
    %v502 = vsel %vm501, %v450, %v500
    %vm503 = vcmp.eq.s32.totalorder %v58, 3
    %v504 = vsel %vm503, %v473, %v502
    %vm505 = vcmp.eq.s32.totalorder %v58, 4
    %v506 = vsel %vm505, %v496, %v504
    %vm507 = vcmask 64512
    %508 = vst.msk [vmem:[%s9] sm:$0xff] %vm507, %v506
    // Predicated region
    $region34: #{agent_forward.1} parent=1 // pred_check
      _
    $region35: #{agent_forward.1} parent=1 // pred_check_branch
      %510 = sbr.rel (0) target = $region37
    $region36: #{agent_forward.1} parent=1 // pred_region
      _
    $region37: #{agent_forward.1} parent=1 // pred_fallthru
      _
    // Predicated region
    $region38: #{agent_forward.1} parent=1 // pred_check
      _
    $region39: #{agent_forward.1} parent=1 // pred_check_branch
      %512 = sbr.rel (0) target = $region41
    $region40: #{agent_forward.1} parent=1 // pred_region
      _
    $region41: #{agent_forward.1} parent=1 // pred_fallthru
      _
    // Predicated region
    $region42: #{agent_forward.1} parent=1 // pred_check
      _
    $region43: #{agent_forward.1} parent=1 // pred_check_branch
      %514 = sbr.rel (0) target = $region45
    $region44: #{agent_forward.1} parent=1 // pred_region
      _
    $region45: #{agent_forward.1} parent=1 // pred_fallthru
      _
    // Predicated region
    $region46: #{agent_forward.1} parent=1 // pred_check
      _
    $region47: #{agent_forward.1} parent=1 // pred_check_branch
      %516 = sbr.rel (0) target = $region49
    $region48: #{agent_forward.1} parent=1 // pred_region
      _
    $region49: #{agent_forward.1} parent=1 // pred_fallthru
      _
    // Predicated region
    $region50: #{agent_forward.1} parent=1 // pred_check
      _
    $region51: #{agent_forward.1} parent=1 // pred_check_branch
      %518 = sbr.rel (0) target = $region53
    $region52: #{agent_forward.1} parent=1 // pred_region
      _
    $region53: #{agent_forward.1} parent=1 // pred_fallthru
      _
    // Predicated region
    $region54: #{agent_forward.1} parent=1 // pred_check
      _
    $region55: #{agent_forward.1} parent=1 // pred_check_branch
      %520 = sbr.rel (0) target = $region57
    $region56: #{agent_forward.1} parent=1 // pred_region
      _
    $region57: #{agent_forward.1} parent=1 // pred_fallthru
      _
    // Predicated region
    $region58: #{agent_forward.1} parent=1 // pred_check
      _
    $region59: #{agent_forward.1} parent=1 // pred_check_branch
      %522 = sbr.rel (0) target = $region61
    $region60: #{agent_forward.1} parent=1 // pred_region
      _
    $region61: #{agent_forward.1} parent=1 // pred_fallthru
      _
    // Predicated region
    $region62: #{agent_forward.1} parent=1 // pred_check
      _
    $region63: #{agent_forward.1} parent=1 // pred_check_branch
      %524 = sbr.rel (0) target = $region65
    $region64: #{agent_forward.1} parent=1 // pred_region
      _
    $region65: #{agent_forward.1} parent=1 // pred_fallthru
      _
    %525 = vsyncpa [#allocation3], 1
    %526 = vsyncpa [#allocation5], 1

</llo_original>
